<compile_context>
chip_gen: v6e
topology: v6e:2x2x1
jax: 0.10.0
libtpu: 0.0.40
codegen_flags: <defaults>
</compile_context>

<pallas_src>
import functools

import jax
import jax.numpy as jnp
from jax.experimental import pallas as pl
from jax.experimental.pallas import tpu as pltpu


def _round_up(x, m):
    return (x + m - 1) // m * m


def _norm_stoich_kernel(fea_ref, idx_ref, w_ref, b_ref, out_ref,
                        seg_max_ref, seg_sum_ref, gate_ref,
                        *, tile_n, s_pad):
    p = pl.program_id(0)          # 0: accumulate per-segment stats, 1: normalise
    i = pl.program_id(1)          # row tile
    row0 = pl.multiple_of(i * tile_n, tile_n)

    # One-hot segment membership for this row tile -- built ONCE and reused by
    # every masked reduction / gather below.  Segments sit on the lane axis
    # (s_pad is a multiple of 128), rows on the sublane axis.
    idx = idx_ref[...]                                                   # (tile_n, 1) i32
    seg_iota = jax.lax.broadcasted_iota(jnp.int32, (tile_n, s_pad), 1)
    onehot = idx == seg_iota                                             # (tile_n, s_pad)

    @pl.when(p == 0)
    def _accumulate():
        @pl.when(i == 0)
        def _init():
            seg_max_ref[...] = jnp.full((1, s_pad), -jnp.inf, jnp.float32)
            seg_sum_ref[...] = jnp.zeros((1, s_pad), jnp.float32)

        # gate = gate_nn(fea): a (D,1) matmul would use <0.1% of the MXU, so
        # keep it on the VPU (multiply) + XLU (lane reduction) instead.
        fea = fea_ref[...].astype(jnp.float32)                           # (tile_n, D)
        w = w_ref[...].astype(jnp.float32)                               # (1, D)
        b = b_ref[...].astype(jnp.float32)                               # (1, 1)
        gate = jnp.sum(fea * w, axis=1, keepdims=True) + b               # (tile_n, 1)
        # Cache the raw gate so pass 1 never has to re-stream fea from HBM.
        gate_ref[pl.ds(row0, tile_n), :] = gate

        # Online (flash-style) update of the running per-segment max / sum.
        run_max = seg_max_ref[...]                                       # (1, s_pad)
        run_sum = seg_sum_ref[...]                                       # (1, s_pad)
        tile_max = jnp.max(jnp.where(onehot, gate, -jnp.inf),
                           axis=0, keepdims=True)                        # (1, s_pad)
        new_max = jnp.maximum(run_max, tile_max)
        # Rescale previously accumulated sums; still-empty segments keep 0.
        corr = jnp.where(new_max == -jnp.inf, 0.0, jnp.exp(run_max - new_max))
        g_max = jnp.sum(jnp.where(onehot, new_max, 0.0),
                        axis=1, keepdims=True)                           # (tile_n, 1)
        e = jnp.exp(gate - g_max)                                        # (tile_n, 1)
        tile_sum = jnp.sum(jnp.where(onehot, e, 0.0), axis=0, keepdims=True)
        seg_max_ref[...] = new_max
        seg_sum_ref[...] = run_sum * corr + tile_sum

    @pl.when(p == 1)
    def _normalize():
        @pl.when(i == 0)
        def _finalize_stats():
            # S reciprocals on the EUP instead of N divides on the VPU path.
            denom = seg_sum_ref[...] + 1e-13
            inv = pl.reciprocal(denom, approx=True)
            # Two Newton steps -> full f32 accuracy (4 VPU ops on one vreg).
            inv = inv * (2.0 - denom * inv)
            inv = inv * (2.0 - denom * inv)
            seg_sum_ref[...] = inv            # scratch now holds 1/(sum + eps)

        gate = gate_ref[pl.ds(row0, tile_n), :]                          # (tile_n, 1)
        g_max = jnp.sum(jnp.where(onehot, seg_max_ref[...], 0.0),
                        axis=1, keepdims=True)
        g_inv = jnp.sum(jnp.where(onehot, seg_sum_ref[...], 0.0),
                        axis=1, keepdims=True)
        out_ref[...] = (jnp.exp(gate - g_max) * g_inv).astype(out_ref.dtype)


def norm_stoich(fea, index, weight, bias, num_segments, *, tile_n=256):
    """Normalised stoichiometries (segment softmax of gate_nn(fea) over `index`).

    fea: (N, D) float (kept in its native dtype for the HBM->VMEM DMA)
    index: (N,) int segment ids in [0, num_segments)
    weight: (D, 1) gate_nn Linear weight; bias: (1,) gate_nn Linear bias.
    """
    N, D = fea.shape

    # Row-tile sizing: keep the (tile_n, D) fea block a few MiB so double
    # buffering fits v7x's 64 MiB VMEM (v5e/v6e have 128 MiB).  Rows are
    # aligned to 16 so f32 and bf16 blocks both satisfy the sublane tiling.
    tile_n = max(16, min(_round_up(tile_n, 16), _round_up(N, 16)))
    n_pad = _round_up(N, tile_n)
    num_tiles = n_pad // tile_n
    # Segments live on the lane axis; pad to 128 lanes and reserve one extra
    # "dummy" segment (id == num_segments) that absorbs padded rows.
    s_pad = _round_up(num_segments + 1, 128)

    fea_p = jnp.pad(fea, ((0, n_pad - N), (0, 0)))           # native dtype
    idx_p = jnp.pad(index.astype(jnp.int32), (0, n_pad - N),
                    constant_values=num_segments).reshape(n_pad, 1)
    w_row = weight.reshape(1, D)                              # native dtype
    b2d = bias.astype(jnp.float32).reshape(1, 1)

    kernel = functools.partial(_norm_stoich_kernel, tile_n=tile_n, s_pad=s_pad)
    out = pl.pallas_call(
        kernel,
        out_shape=jax.ShapeDtypeStruct((n_pad, 1), fea.dtype),
        grid=(2, num_tiles),          # (pass, row tile); pass is the slow axis
        in_specs=[
            # fea is only consumed in pass 0; pinning its block index during
            # pass 1 avoids re-streaming it from HBM.
            pl.BlockSpec((tile_n, D), lambda p, i: (i * (1 - p), 0)),
            pl.BlockSpec((tile_n, 1), lambda p, i: (i, 0)),          # index
            pl.BlockSpec((1, D), lambda p, i: (0, 0)),               # gate weight
            pl.BlockSpec((1, 1), lambda p, i: (0, 0)),               # gate bias
        ],
        # Output blocks are only written in pass 1.
        out_specs=pl.BlockSpec((tile_n, 1), lambda p, i: (i * p, 0)),
        scratch_shapes=[
            pltpu.VMEM((1, s_pad), jnp.float32),   # running per-segment max
            pltpu.VMEM((1, s_pad), jnp.float32),   # running sum -> 1/(sum+eps)
            pltpu.VMEM((n_pad, 1), jnp.float32),   # cached gate (pass 0 -> 1)
        ],
        compiler_params=pltpu.CompilerParams(
            # Both grid axes reduce into / read the shared per-segment VMEM
            # scratch, so they must stay sequential.  (A v7x 2-TC version
            # would need per-core partial scratch plus a combine step.)
            dimension_semantics=("arbitrary", "arbitrary")),
    )(fea_p, idx_p, w_row, b2d)
    return out[:N]


def norm_stoich_ref(fea, index, weight, bias, num_segments):
    gate = fea.astype(jnp.float32) @ weight.astype(jnp.float32).reshape(-1, 1)
    gate = gate + bias.astype(jnp.float32).reshape(1, 1)
    seg_max = jax.ops.segment_max(gate, index, num_segments=num_segments)
    gate = jnp.exp(gate - seg_max[index])
    seg_sum = jax.ops.segment_sum(gate, index, num_segments=num_segments)
    return gate / (seg_sum[index] + 1e-13)


if __name__ == "__main__":
    # 300 "elements" spread over 7 "reactions", 64-dim element features.
    # tile_n=128 -> 3 row tiles plus padding, so the multi-tile / online path
    # and the dummy padding segment are all exercised.
    N, D, S = 300, 64, 7

    key = jax.random.PRNGKey(0)
    k_fea, k_w, k_b, k_idx = jax.random.split(key, 4)

    fea = jax.random.normal(k_fea, (N, D), dtype=jnp.float32)
    weight = jax.random.normal(k_w, (D, 1), dtype=jnp.float32) * 0.1
    bias = jax.random.normal(k_b, (1,), dtype=jnp.float32) * 0.1
    index = jax.random.randint(k_idx, (N,), 0, S, dtype=jnp.int32)

    # f32 path
    out = norm_stoich(fea, index, weight, bias, S, tile_n=128)
    out = jax.block_until_ready(out)
    ref = norm_stoich_ref(fea, index, weight, bias, S)
    assert out.shape == (N, 1)
    assert jnp.allclose(out, ref, atol=1e-5, rtol=1e-5), \
        float(jnp.max(jnp.abs(out - ref)))
    seg_tot = jax.ops.segment_sum(out, index, num_segments=S)
    assert jnp.allclose(seg_tot, jnp.ones((S, 1)), atol=1e-4)

    # bf16 path: fea/weight are DMA'd as bf16 (half the HBM traffic), compute
    # stays f32 inside the kernel, output is stored in the input dtype.
    fea_bf = fea.astype(jnp.bfloat16)
    w_bf = weight.astype(jnp.bfloat16)
    out_bf = norm_stoich(fea_bf, index, w_bf, bias, S, tile_n=128)
    out_bf = jax.block_until_ready(out_bf)
    ref_bf = norm_stoich_ref(fea_bf.astype(jnp.float32), index,
                             w_bf.astype(jnp.float32), bias, S)
    assert out_bf.dtype == jnp.bfloat16
    assert jnp.allclose(out_bf.astype(jnp.float32), ref_bf,
                        atol=5e-3, rtol=5e-2)

    print("KERNEL_OK")
</pallas_src>

<mosaic_0001>
module attributes {stable_mosaic.version = 11 : i64} {
  func.func @_norm_stoich_kernel(%arg0: i32, %arg1: i32, %arg2: memref<128x64xf32, #tpu.memory_space<vmem>>, %arg3: memref<128x1xi32, #tpu.memory_space<vmem>>, %arg4: memref<1x64xf32, #tpu.memory_space<vmem>>, %arg5: memref<1x1xf32, #tpu.memory_space<vmem>>, %arg6: memref<128x1xf32, #tpu.memory_space<vmem>>, %arg7: memref<1x128xf32, #tpu.memory_space<vmem>>, %arg8: memref<1x128xf32, #tpu.memory_space<vmem>>, %arg9: memref<384x1xf32, #tpu.memory_space<vmem>>) attributes {dimension_semantics = [#tpu.dimension_semantics<arbitrary>, #tpu.dimension_semantics<arbitrary>], iteration_bounds = array<i64: 2, 3>, scalar_prefetch = 0 : i64, scratch_operands = 3 : i64, tpu.core_type = #tpu.core_type<tc>, window_params = [{transform_indices = @transform_0, window_bounds = array<i64: 128, 64>}, {transform_indices = @transform_1, window_bounds = array<i64: 128, 1>}, {pipeline_mode = #tpu.pipeline_mode<synchronous>, transform_indices = @transform_2, window_bounds = array<i64: 1, 64>}, {pipeline_mode = #tpu.pipeline_mode<synchronous>, transform_indices = @transform_3, window_bounds = array<i64: 1, 1>}, {transform_indices = @transform_4, window_bounds = array<i64: 128, 1>}]} {
    %c128_i32 = arith.constant 128 : i32
    %0 = arith.muli %arg1, %c128_i32 : i32
    %1 = tpu.assume_multiple %0, 128 : i32
    %c0 = arith.constant 0 : index
    %c0_0 = arith.constant 0 : index
    %2 = vector.load %arg3[%c0, %c0_0] : memref<128x1xi32, #tpu.memory_space<vmem>>, vector<128x1xi32>
    %3 = tpu.iota {dimensions = array<i32: 1>} : vector<128x128xi32>
    %4 = vector.broadcast %2 : vector<128x1xi32> to vector<128x128xi32>
    %5 = arith.cmpi eq, %4, %3 : vector<128x128xi32>
    %c0_i32 = arith.constant 0 : i32
    %6 = arith.cmpi eq, %arg0, %c0_i32 : i32
    %7 = arith.extui %6 : i1 to i32
    %c0_i32_1 = arith.constant 0 : i32
    %8 = arith.cmpi ne, %7, %c0_i32_1 : i32
    scf.if %8 {
      %c0_i32_3 = arith.constant 0 : i32
      %12 = arith.cmpi eq, %arg1, %c0_i32_3 : i32
      %13 = arith.extui %12 : i1 to i32
      %c0_i32_4 = arith.constant 0 : i32
      %14 = arith.cmpi ne, %13, %c0_i32_4 : i32
      scf.if %14 {
        %cst_28 = arith.constant 0xFF800000 : f32
        %59 = vector.broadcast %cst_28 : f32 to vector<1x128xf32>
        %c0_29 = arith.constant 0 : index
        %c0_30 = arith.constant 0 : index
        %60 = vector.load %arg7[%c0_29, %c0_30] : memref<1x128xf32, #tpu.memory_space<vmem>>, vector<1x128xf32>
        tpu.vector_store %arg7[%c0_29, %c0_30], %59 {strides = array<i32>} : memref<1x128xf32, #tpu.memory_space<vmem>>, vector<1x128xf32>,
        %cst_31 = arith.constant 0.000000e+00 : f32
        %61 = vector.broadcast %cst_31 : f32 to vector<1x128xf32>
        %c0_32 = arith.constant 0 : index
        %c0_33 = arith.constant 0 : index
        %62 = vector.load %arg8[%c0_32, %c0_33] : memref<1x128xf32, #tpu.memory_space<vmem>>, vector<1x128xf32>
        tpu.vector_store %arg8[%c0_32, %c0_33], %61 {strides = array<i32>} : memref<1x128xf32, #tpu.memory_space<vmem>>, vector<1x128xf32>,
      } else {
      }
      %c0_5 = arith.constant 0 : index
      %c0_6 = arith.constant 0 : index
      %15 = vector.load %arg2[%c0_5, %c0_6] : memref<128x64xf32, #tpu.memory_space<vmem>>, vector<128x64xf32>
      %c0_7 = arith.constant 0 : index
      %c0_8 = arith.constant 0 : index
      %16 = vector.load %arg4[%c0_7, %c0_8] : memref<1x64xf32, #tpu.memory_space<vmem>>, vector<1x64xf32>
      %c0_9 = arith.constant 0 : index
      %c0_10 = arith.constant 0 : index
      %17 = vector.load %arg5[%c0_9, %c0_10] : memref<1x1xf32, #tpu.memory_space<vmem>>, vector<1x1xf32>
      %18 = vector.broadcast %16 : vector<1x64xf32> to vector<128x64xf32>
      %19 = arith.mulf %15, %18 : vector<128x64xf32>
      %cst = arith.constant dense<0.000000e+00> : vector<128xf32>
      %20 = vector.multi_reduction <add>, %19, %cst [1] : vector<128x64xf32> to vector<128xf32>
      %21 = vector.shape_cast %20 : vector<128xf32> to vector<128x1xf32>
      %22 = vector.broadcast %17 : vector<1x1xf32> to vector<128x1xf32>
      %23 = arith.addf %21, %22 : vector<128x1xf32>
      %24 = arith.index_cast %1 : i32 to index
      %c0_11 = arith.constant 0 : index
      %25 = vector.load %arg9[%24, %c0_11] : memref<384x1xf32, #tpu.memory_space<vmem>>, vector<128x1xf32>
      tpu.vector_store %arg9[%24, %c0_11], %23 {strides = array<i32>} : memref<384x1xf32, #tpu.memory_space<vmem>>, vector<128x1xf32>,
      %c0_12 = arith.constant 0 : index
      %c0_13 = arith.constant 0 : index
      %26 = vector.load %arg7[%c0_12, %c0_13] : memref<1x128xf32, #tpu.memory_space<vmem>>, vector<1x128xf32>
      %c0_14 = arith.constant 0 : index
      %c0_15 = arith.constant 0 : index
      %27 = vector.load %arg8[%c0_14, %c0_15] : memref<1x128xf32, #tpu.memory_space<vmem>>, vector<1x128xf32>
      %cst_16 = arith.constant 0xFF800000 : f32
      %28 = vector.shape_cast %23 : vector<128x1xf32> to vector<128x1xf32>
      %29 = vector.broadcast %28 : vector<128x1xf32> to vector<128x128xf32>
      %30 = vector.broadcast %cst_16 : f32 to vector<128x128xf32>
      %31 = arith.select %5, %29, %30 : vector<128x128xi1>, vector<128x128xf32>
      %cst_17 = arith.constant dense<0xFF800000> : vector<128xf32>
      %32 = vector.multi_reduction <maximumf>, %31, %cst_17 [0] : vector<128x128xf32> to vector<128xf32>
      %33 = vector.shape_cast %32 : vector<128xf32> to vector<1x128xf32>
      %34 = arith.maximumf %26, %33 : vector<1x128xf32>
      %cst_18 = arith.constant 0xFF800000 : f32
      %35 = vector.broadcast %cst_18 : f32 to vector<1x128xf32>
      %36 = arith.cmpf oeq, %34, %35 : vector<1x128xf32>
      %37 = arith.subf %26, %34 : vector<1x128xf32>
      %38 = math.exp %37 : vector<1x128xf32>
      %cst_19 = arith.constant 0.000000e+00 : f32
      %39 = vector.broadcast %cst_19 : f32 to vector<1x128xf32>
      %40 = arith.select %36, %39, %38 : vector<1x128xi1>, vector<1x128xf32>
      %cst_20 = arith.constant 0.000000e+00 : f32
      %41 = vector.shape_cast %34 : vector<1x128xf32> to vector<1x128xf32>
      %42 = vector.broadcast %41 : vector<1x128xf32> to vector<128x128xf32>
      %43 = vector.broadcast %cst_20 : f32 to vector<128x128xf32>
      %44 = arith.select %5, %42, %43 : vector<128x128xi1>, vector<128x128xf32>
      %cst_21 = arith.constant dense<0.000000e+00> : vector<128xf32>
      %45 = vector.multi_reduction <add>, %44, %cst_21 [1] : vector<128x128xf32> to vector<128xf32>
      %46 = vector.shape_cast %45 : vector<128xf32> to vector<128x1xf32>
      %47 = arith.subf %23, %46 : vector<128x1xf32>
      %48 = math.exp %47 : vector<128x1xf32>
      %cst_22 = arith.constant 0.000000e+00 : f32
      %49 = vector.shape_cast %48 : vector<128x1xf32> to vector<128x1xf32>
      %50 = vector.broadcast %49 : vector<128x1xf32> to vector<128x128xf32>
      %51 = vector.broadcast %cst_22 : f32 to vector<128x128xf32>
      %52 = arith.select %5, %50, %51 : vector<128x128xi1>, vector<128x128xf32>
      %cst_23 = arith.constant dense<0.000000e+00> : vector<128xf32>
      %53 = vector.multi_reduction <add>, %52, %cst_23 [0] : vector<128x128xf32> to vector<128xf32>
      %54 = vector.shape_cast %53 : vector<128xf32> to vector<1x128xf32>
      %c0_24 = arith.constant 0 : index
      %c0_25 = arith.constant 0 : index
      %55 = vector.load %arg7[%c0_24, %c0_25] : memref<1x128xf32, #tpu.memory_space<vmem>>, vector<1x128xf32>
      tpu.vector_store %arg7[%c0_24, %c0_25], %34 {strides = array<i32>} : memref<1x128xf32, #tpu.memory_space<vmem>>, vector<1x128xf32>,
      %56 = arith.mulf %27, %40 : vector<1x128xf32>
      %57 = arith.addf %56, %54 : vector<1x128xf32>
      %c0_26 = arith.constant 0 : index
      %c0_27 = arith.constant 0 : index
      %58 = vector.load %arg8[%c0_26, %c0_27] : memref<1x128xf32, #tpu.memory_space<vmem>>, vector<1x128xf32>
      tpu.vector_store %arg8[%c0_26, %c0_27], %57 {strides = array<i32>} : memref<1x128xf32, #tpu.memory_space<vmem>>, vector<1x128xf32>,
    } else {
    }
    %c1_i32 = arith.constant 1 : i32
    %9 = arith.cmpi eq, %arg0, %c1_i32 : i32
    %10 = arith.extui %9 : i1 to i32
    %c0_i32_2 = arith.constant 0 : i32
    %11 = arith.cmpi ne, %10, %c0_i32_2 : i32
    scf.if %11 {
      %c0_i32_3 = arith.constant 0 : i32
      %12 = arith.cmpi eq, %arg1, %c0_i32_3 : i32
      %13 = arith.extui %12 : i1 to i32
      %c0_i32_4 = arith.constant 0 : i32
      %14 = arith.cmpi ne, %13, %c0_i32_4 : i32
      scf.if %14 {
        %c0_15 = arith.constant 0 : index
        %c0_16 = arith.constant 0 : index
        %35 = vector.load %arg8[%c0_15, %c0_16] : memref<1x128xf32, #tpu.memory_space<vmem>>, vector<1x128xf32>
        %cst_17 = arith.constant 9.99999982E-14 : f32
        %36 = vector.broadcast %cst_17 : f32 to vector<1x128xf32>
        %37 = arith.addf %35, %36 : vector<1x128xf32>
        %38 = tpu.reciprocal %37 {approx = true} : vector<1x128xf32> -> vector<1x128xf32>
        %39 = arith.mulf %37, %38 : vector<1x128xf32>
        %cst_18 = arith.constant 2.000000e+00 : f32
        %40 = vector.broadcast %cst_18 : f32 to vector<1x128xf32>
        %41 = arith.subf %40, %39 : vector<1x128xf32>
        %42 = arith.mulf %38, %41 : vector<1x128xf32>
        %43 = arith.mulf %37, %42 : vector<1x128xf32>
        %cst_19 = arith.constant 2.000000e+00 : f32
        %44 = vector.broadcast %cst_19 : f32 to vector<1x128xf32>
        %45 = arith.subf %44, %43 : vector<1x128xf32>
        %46 = arith.mulf %42, %45 : vector<1x128xf32>
        %c0_20 = arith.constant 0 : index
        %c0_21 = arith.constant 0 : index
        %47 = vector.load %arg8[%c0_20, %c0_21] : memref<1x128xf32, #tpu.memory_space<vmem>>, vector<1x128xf32>
        tpu.vector_store %arg8[%c0_20, %c0_21], %46 {strides = array<i32>} : memref<1x128xf32, #tpu.memory_space<vmem>>, vector<1x128xf32>,
      } else {
      }
      %15 = arith.index_cast %1 : i32 to index
      %c0_5 = arith.constant 0 : index
      %16 = vector.load %arg9[%15, %c0_5] : memref<384x1xf32, #tpu.memory_space<vmem>>, vector<128x1xf32>
      %c0_6 = arith.constant 0 : index
      %c0_7 = arith.constant 0 : index
      %17 = vector.load %arg7[%c0_6, %c0_7] : memref<1x128xf32, #tpu.memory_space<vmem>>, vector<1x128xf32>
      %cst = arith.constant 0.000000e+00 : f32
      %18 = vector.shape_cast %17 : vector<1x128xf32> to vector<1x128xf32>
      %19 = vector.broadcast %18 : vector<1x128xf32> to vector<128x128xf32>
      %20 = vector.broadcast %cst : f32 to vector<128x128xf32>
      %21 = arith.select %5, %19, %20 : vector<128x128xi1>, vector<128x128xf32>
      %cst_8 = arith.constant dense<0.000000e+00> : vector<128xf32>
      %22 = vector.multi_reduction <add>, %21, %cst_8 [1] : vector<128x128xf32> to vector<128xf32>
      %23 = vector.shape_cast %22 : vector<128xf32> to vector<128x1xf32>
      %c0_9 = arith.constant 0 : index
      %c0_10 = arith.constant 0 : index
      %24 = vector.load %arg8[%c0_9, %c0_10] : memref<1x128xf32, #tpu.memory_space<vmem>>, vector<1x128xf32>
      %cst_11 = arith.constant 0.000000e+00 : f32
      %25 = vector.shape_cast %24 : vector<1x128xf32> to vector<1x128xf32>
      %26 = vector.broadcast %25 : vector<1x128xf32> to vector<128x128xf32>
      %27 = vector.broadcast %cst_11 : f32 to vector<128x128xf32>
      %28 = arith.select %5, %26, %27 : vector<128x128xi1>, vector<128x128xf32>
      %cst_12 = arith.constant dense<0.000000e+00> : vector<128xf32>
      %29 = vector.multi_reduction <add>, %28, %cst_12 [1] : vector<128x128xf32> to vector<128xf32>
      %30 = vector.shape_cast %29 : vector<128xf32> to vector<128x1xf32>
      %31 = arith.subf %16, %23 : vector<128x1xf32>
      %32 = math.exp %31 : vector<128x1xf32>
      %33 = arith.mulf %32, %30 : vector<128x1xf32>
      %c0_13 = arith.constant 0 : index
      %c0_14 = arith.constant 0 : index
      %34 = vector.load %arg6[%c0_13, %c0_14] : memref<128x1xf32, #tpu.memory_space<vmem>>, vector<128x1xf32>
      tpu.vector_store %arg6[%c0_13, %c0_14], %33 {strides = array<i32>} : memref<128x1xf32, #tpu.memory_space<vmem>>, vector<128x1xf32>,
    } else {
    }
    return
  }
  func.func @transform_0(%arg0: i32, %arg1: i32) -> (i32, i32) {
    %c1_i32 = arith.constant 1 : i32
    %0 = arith.subi %c1_i32, %arg0 : i32
    %1 = arith.muli %arg1, %0 : i32
    %c0_i32 = arith.constant 0 : i32
    %c0_i32_0 = arith.constant 0 : i32
    return %1, %c0_i32 : i32, i32
  }
  func.func @transform_1(%arg0: i32, %arg1: i32) -> (i32, i32) {
    %c0_i32 = arith.constant 0 : i32
    %c0_i32_0 = arith.constant 0 : i32
    return %arg1, %c0_i32 : i32, i32
  }
  func.func @transform_2(%arg0: i32, %arg1: i32) -> (i32, i32) {
    %c0_i32 = arith.constant 0 : i32
    %c0_i32_0 = arith.constant 0 : i32
    %c0_i32_1 = arith.constant 0 : i32
    return %c0_i32, %c0_i32_0 : i32, i32
  }
  func.func @transform_3(%arg0: i32, %arg1: i32) -> (i32, i32) {
    %c0_i32 = arith.constant 0 : i32
    %c0_i32_0 = arith.constant 0 : i32
    %c0_i32_1 = arith.constant 0 : i32
    return %c0_i32, %c0_i32_0 : i32, i32
  }
  func.func @transform_4(%arg0: i32, %arg1: i32) -> (i32, i32) {
    %0 = arith.muli %arg1, %arg0 : i32
    %c0_i32 = arith.constant 0 : i32
    %c0_i32_0 = arith.constant 0 : i32
    return %0, %c0_i32 : i32, i32
  }
}

</mosaic_0001>

<llo_original>
// kernel: tpu_custom_call.1
$region0: #{tpu_custom_call.1}
  #allocation0 [shape = 'u32[]', space=smem, size = 0x4, offset = 0x4, fixed_abs, tag = 'smem constant byte address 0x4 - core index']
  #allocation1 [shape = 'u32[144,128]{1,0:T(1,128)}', space=vmem, size = 0x12000, scoped, tag = 'internal scratch']
  #allocation2 [shape = 'f32[1,128]{1,0:T(1,128)}', space=vmem, size = 0x200, scoped, tag = 'scratch operand']
  #allocation3 [shape = 'f32[1,128]{1,0:T(1,128)}', space=vmem, size = 0x200, scoped, tag = 'scratch operand']
  #allocation4 [shape = 'f32[384,1]{1,0:T(8,128)}', space=vmem, size = 0x30000, scoped, tag = 'scratch operand']
  #allocation5 [shape = 'f32[1,1]{1,0:T(1,128)S(1)}', space=vmem, size = 0x200, scoped, tag = 'scoped memory for tpu_custom_call.1']
  %s0 = inlined_call_operand.vmem [shape: f32[384,64], index: 0, kind: input, shape index: {}]
  %s1 = inlined_call_operand.vmem [shape: s32[384,1], index: 1, kind: input, shape index: {}]
  %s2 = inlined_call_operand.vmem [shape: f32[1,64], index: 2, kind: input, shape index: {}]
  %s3 = inlined_call_operand.<no memory space> [shape: f32[1,1], index: 3, kind: input, shape index: {}]
  %s4 = inlined_call_operand.vmem [shape: f32[384,1], index: 4, kind: output, shape index: {}]
  %s5 = sld [smem:[#allocation0]]
  $region65: #{tpu_custom_call.1} parent=0
    _
  %s7 = ssub.s32 1, %s5
  %s8 = scalar_select 0, %s7, %s5
  %v9 = vstv %s3
  %10 = vst [vmem:[#allocation5] sm:$0x1] %v9
  loop: start=0, step=1, limit=8
  $region2: #{tpu_custom_call.1} parent=0 // loop_pre_header
    _
  $region3: #{tpu_custom_call.1} parent=0 // loop_header
    %s12 = sphi 0, %s16
    %p13 = scmp.ge.s32.totalorder %s12, 8
    %s19 = sphi 0, %s31
    %s20 = sphi 0, %s27
    %s21 = sphi 0, %s19
    %s22 = sphi 0, %s20
    %s23 = sphi 0, %s21
    %s24 = sphi 0, %s22
    %s38 = sphi 0, %s40
    %s41 = sphi 0, %s38
    %s42 = sphi 0, %s41
    %s58 = sphi 0, %s42
    %s64 = sphi 0, %s66
    %s67 = sphi 0, %s64
    %s68 = sphi 0, %s67
    %s84 = sphi 0, %s68
    %s88 = sphi 0, %s88
    %s90 = sphi 0, %s88
    %s91 = sphi 0, %s90
    %s105 = sphi 0, %s91
    %s109 = sphi 0, %s109
    %s111 = sphi 0, %s109
    %s112 = sphi 0, %s111
    %s126 = sphi 0, %s112
    %s134 = sphi 0, %s136
    %s137 = sphi 0, %s134
    %s138 = sphi 0, %s137
    %s154 = sphi 0, %s138
  $region4: #{tpu_custom_call.1} parent=0 // loop_header_branch
    %15 = sbr.rel (%p13) target = $region8
  $region5: #{tpu_custom_call.1} parent=0 // loop_body
    %s17 = ssub.s32 %s12, 1
    %s18 = ssub.s32 %s12, 2
    %s25 = sadd.s32 1, %s20
    %p26 = scmp.ge.s32.totalorder %s25, 3
    %s27 = scalar_select %p26, 0, %s25
    %s28 = sadd.s32 1, %s19
    %s29 = scalar_select %p26, %s28, %s19
    %p30 = scmp.ge.s32.totalorder %s29, 2
    %s31 = scalar_select %p30, 0, %s29
    %s32 = ssub.s32 1, %s19
    %s33 = smul.u32 %s20, %s32
    %s34 = ssub.s32 1, %s31
    %s35 = smul.u32 %s27, %s34
    %s36 = ssub.s32 %s33, %s35
    %p37 = scmp.eq.s32.totalorder %s36, 0
    %s39 = sadd.s32 %s38, 1
    %s40 = scalar_select %p37, %s38, %s39
    %p43 = pneg %p37
    %p44 = scmp.eq.s32.totalorder %s12, 5
    %p45 = por %p43, %p44
    %p46 = scmp.ne.s32.totalorder %s38, %s41
    %p47 = scmp.eq.s32.totalorder %s12, 0
    %p48 = por %p46, %p47
    %p49 = scmp.ne.s32.totalorder %s38, %s41
    %p50 = scmp.eq.s32.totalorder %s17, 5
    %p51 = por %p49, %p50
    %p52 = scmp.ne.s32.totalorder %s41, %s42
    %p53 = scmp.eq.s32.totalorder %s17, 0
    %p54 = por %p52, %p53
    %p55 = scmp.ne.s32.totalorder %s41, %s42
    %p56 = scmp.eq.s32.totalorder %s18, 5
    %p57 = por %p55, %p56
    %p59 = scmp.ne.s32.totalorder %s42, %s58
    %p60 = scmp.eq.s32.totalorder %s18, 0
    %p61 = por %p59, %p60
    %s62 = ssub.s32 %s20, %s27
    %p63 = scmp.eq.s32.totalorder %s62, 0
    %s65 = sadd.s32 %s64, 1
    %s66 = scalar_select %p63, %s64, %s65
    %p69 = pneg %p63
    %p70 = scmp.eq.s32.totalorder %s12, 5
    %p71 = por %p69, %p70
    %p72 = scmp.ne.s32.totalorder %s64, %s67
    %p73 = scmp.eq.s32.totalorder %s12, 0
    %p74 = por %p72, %p73
    %p75 = scmp.ne.s32.totalorder %s64, %s67
    %p76 = scmp.eq.s32.totalorder %s17, 5
    %p77 = por %p75, %p76
    %p78 = scmp.ne.s32.totalorder %s67, %s68
    %p79 = scmp.eq.s32.totalorder %s17, 0
    %p80 = por %p78, %p79
    %p81 = scmp.ne.s32.totalorder %s67, %s68
    %p82 = scmp.eq.s32.totalorder %s18, 5
    %p83 = por %p81, %p82
    %p85 = scmp.ne.s32.totalorder %s68, %s84
    %p86 = scmp.eq.s32.totalorder %s18, 0
    %p87 = por %p85, %p86
    %s89 = sadd.s32 %s88, 1
    %p92 = scmp.eq.s32.totalorder %s12, 5
    %p93 = scmp.ne.s32.totalorder %s88, %s90
    %p94 = scmp.eq.s32.totalorder %s12, 0
    %p95 = por %p93, %p94
    %p96 = scmp.ne.s32.totalorder %s88, %s90
    %p97 = scmp.eq.s32.totalorder %s17, 5
    %p98 = por %p96, %p97
    %p99 = scmp.ne.s32.totalorder %s90, %s91
    %p100 = scmp.eq.s32.totalorder %s17, 0
    %p101 = por %p99, %p100
    %p102 = scmp.ne.s32.totalorder %s90, %s91
    %p103 = scmp.eq.s32.totalorder %s18, 5
    %p104 = por %p102, %p103
    %p106 = scmp.ne.s32.totalorder %s91, %s105
    %p107 = scmp.eq.s32.totalorder %s18, 0
    %p108 = por %p106, %p107
    %s110 = sadd.s32 %s109, 1
    %p113 = scmp.eq.s32.totalorder %s12, 5
    %p114 = scmp.ne.s32.totalorder %s109, %s111
    %p115 = scmp.eq.s32.totalorder %s12, 0
    %p116 = por %p114, %p115
    %p117 = scmp.ne.s32.totalorder %s109, %s111
    %p118 = scmp.eq.s32.totalorder %s17, 5
    %p119 = por %p117, %p118
    %p120 = scmp.ne.s32.totalorder %s111, %s112
    %p121 = scmp.eq.s32.totalorder %s17, 0
    %p122 = por %p120, %p121
    %p123 = scmp.ne.s32.totalorder %s111, %s112
    %p124 = scmp.eq.s32.totalorder %s18, 5
    %p125 = por %p123, %p124
    %p127 = scmp.ne.s32.totalorder %s112, %s126
    %p128 = scmp.eq.s32.totalorder %s18, 0
    %p129 = por %p127, %p128
    %s130 = smul.u32 %s20, %s19
    %s131 = smul.u32 %s27, %s31
    %s132 = ssub.s32 %s130, %s131
    %p133 = scmp.eq.s32.totalorder %s132, 0
    %s135 = sadd.s32 %s134, 1
    %s136 = scalar_select %p133, %s134, %s135
    %p139 = pneg %p133
    %p140 = scmp.eq.s32.totalorder %s12, 5
    %p141 = por %p139, %p140
    %p142 = scmp.ne.s32.totalorder %s134, %s137
    %p143 = scmp.eq.s32.totalorder %s12, 0
    %p144 = por %p142, %p143
    %p145 = scmp.ne.s32.totalorder %s134, %s137
    %p146 = scmp.eq.s32.totalorder %s17, 5
    %p147 = por %p145, %p146
    %p148 = scmp.ne.s32.totalorder %s137, %s138
    %p149 = scmp.eq.s32.totalorder %s17, 0
    %p150 = por %p148, %p149
    %p151 = scmp.ne.s32.totalorder %s137, %s138
    %p152 = scmp.eq.s32.totalorder %s18, 5
    %p153 = por %p151, %p152
    %p155 = scmp.ne.s32.totalorder %s138, %s154
    %p156 = scmp.eq.s32.totalorder %s18, 0
    %p157 = por %p155, %p156
    %p158 = scmp.le.s32.totalorder 1, %s12
    %p159 = scmp.lt.s32.totalorder %s12, 7
    %p160 = pnand %p158, %p159
    %p161 = pneg %p160
    // Predicated region
    $region9: #{tpu_custom_call.1} parent=5 // pred_check
      _
    $region10: #{tpu_custom_call.1} parent=5 // pred_check_branch
      %163 = sbr.rel (%p160) target = $region12
    $region11: #{tpu_custom_call.1} parent=5 // pred_region
      %s164 = ssub.s32 %s12, 1
      // Predicated region
      $region13: #{tpu_custom_call.1} parent=11 // pred_check
        %p165 = pneg %p101
      $region14: #{tpu_custom_call.1} parent=11 // pred_check_branch
        %167 = sbr.rel (%p165) target = $region16
      $region15: #{tpu_custom_call.1} parent=11 // pred_region
        _
      $region16: #{tpu_custom_call.1} parent=11 // pred_fallthru
        _
      // Predicated region
      $region17: #{tpu_custom_call.1} parent=11 // pred_check
        %p168 = pneg %p122
      $region18: #{tpu_custom_call.1} parent=11 // pred_check_branch
        %170 = sbr.rel (%p168) target = $region20
      $region19: #{tpu_custom_call.1} parent=11 // pred_region
        _
      $region20: #{tpu_custom_call.1} parent=11 // pred_fallthru
        _
    $region12: #{tpu_custom_call.1} parent=5 // pred_fallthru
      _
    %p171 = scmp.lt.s32.totalorder %s12, 6
    // Predicated region
    $region21: #{tpu_custom_call.1} parent=5 // pred_check
      %p172 = pneg %p171
    $region22: #{tpu_custom_call.1} parent=5 // pred_check_branch
      %174 = sbr.rel (%p172) target = $region24
    $region23: #{tpu_custom_call.1} parent=5 // pred_region
      // Predicated region
      $region25: #{tpu_custom_call.1} parent=23 // pred_check
        %p175 = pneg %p48
      $region26: #{tpu_custom_call.1} parent=23 // pred_check_branch
        %177 = sbr.rel (%p175) target = $region28
      $region27: #{tpu_custom_call.1} parent=23 // pred_region
        %s178 = ssub.s32 1, %s19
        %s179 = smul.u32 %s20, %s178
        %s180 = smul.u32 16, %s179
        %p181 = scmp.lt.s32.totalorder %s180, 47
        %s182 = scalar_select %p181, %s180, 47
        %s183 = smul.addr %s182, 8
        %s184 = scalar_lea.vmem %s0, %s183
        %s185 = ssub.s32 1, %s19
        %s186 = smul.u32 %s20, %s185
        %s187 = smul.u32 16, %s186
      $region28: #{tpu_custom_call.1} parent=23 // pred_fallthru
        _
      // Predicated region
      $region29: #{tpu_custom_call.1} parent=23 // pred_check
        %p188 = pneg %p74
      $region30: #{tpu_custom_call.1} parent=23 // pred_check_branch
        %190 = sbr.rel (%p188) target = $region32
      $region31: #{tpu_custom_call.1} parent=23 // pred_region
        %s191 = smul.u32 16, %s20
        %p192 = scmp.lt.s32.totalorder %s191, 47
        %s193 = scalar_select %p192, %s191, 47
        %s194 = smul.addr %s193, 8
        %s195 = scalar_lea.vmem %s1, %s194
        %s196 = smul.u32 16, %s20
      $region32: #{tpu_custom_call.1} parent=23 // pred_fallthru
        _
    $region24: #{tpu_custom_call.1} parent=5 // pred_fallthru
      _
    %p197 = scmp.le.s32.totalorder 1, %s12
    %p198 = scmp.lt.s32.totalorder %s12, 7
    %p199 = pnand %p197, %p198
    %p200 = pneg %p199
    // Predicated region
    $region33: #{tpu_custom_call.1} parent=5 // pred_check
      _
    $region34: #{tpu_custom_call.1} parent=5 // pred_check_branch
      %202 = sbr.rel (%p199) target = $region36
    $region35: #{tpu_custom_call.1} parent=5 // pred_region
      %s203 = ssub.s32 %s12, 1
      %s204 = ssub.s32 1, %s21
      %s205 = smul.u32 %s22, %s204
      %s206 = smul.u32 16, %s205
      %p207 = scmp.lt.s32.totalorder %s206, 47
      %s208 = scalar_select %p207, %s206, 47
      %s209 = smul.addr %s208, 8
      %s210 = scalar_lea.vmem %s0, %s209
      %p211 = pneg %p54
      %p212 = pneg %p51
      %s213 = smul.u32 16, %s22
      %p214 = scmp.lt.s32.totalorder %s213, 47
      %s215 = scalar_select %p214, %s213, 47
      %s216 = smul.addr %s215, 8
      %s217 = scalar_lea.vmem %s1, %s216
      %p218 = pneg %p80
      %p219 = pneg %p77
      %p220 = pneg %p101
      %p221 = pneg %p98
      %p222 = pneg %p122
      %p223 = pneg %p119
      %p224 = pneg %p150
      %p225 = pneg %p147
      %s226 = smul.u32 %s22, %s21
      %s227 = smul.u32 16, %s226
      %p228 = scmp.lt.s32.totalorder %s227, 47
      %s229 = scalar_select %p228, %s227, 47
      %s230 = smul.addr %s229, 8
      %s231 = scalar_lea.vmem %s4, %s230
      %s232 = ssub.s32 1, %s21
      %s233 = smul.u32 %s22, %s232
      %s234 = smul.u32 16, %s233
      %p235 = scmp.lt.s32.totalorder %s234, 47
      %s236 = scalar_select %p235, %s234, 47
      %s237 = smul.addr %s236, 8
      %s238 = scalar_lea.vmem %s0, %s237
      %s239 = ssub.s32 1, %s21
      %s240 = smul.u32 %s22, %s239
      %s241 = smul.u32 16, %s240
      %s242 = smul.u32 16, %s22
      %p243 = scmp.lt.s32.totalorder %s242, 47
      %s244 = scalar_select %p243, %s242, 47
      %s245 = smul.addr %s244, 8
      %s246 = scalar_lea.vmem %s1, %s245
      %s247 = smul.u32 16, %s22
      %s248 = smul.u32 %s22, %s21
      %s249 = smul.u32 16, %s248
      %p250 = scmp.lt.s32.totalorder %s249, 47
      %s251 = scalar_select %p250, %s249, 47
      %s252 = smul.addr %s251, 8
      %s253 = scalar_lea.vmem %s4, %s252
      %s254 = smul.u32 %s22, %s21
      %s255 = smul.u32 16, %s254
      %s256 = smul.u32 %s22, 128
      %v257 = vld [vmem:[%s246] sm:$0xff]
      %v258 = vld [vmem:[%s246 + $0x8] sm:$0xff]
      %v259 = vld [vmem:[%s246 + $0x10] sm:$0xff]
      %v260 = vld [vmem:[%s246 + $0x18] sm:$0xff]
      %v261 = vld [vmem:[%s246 + $0x20] sm:$0xff]
      %v262 = vld [vmem:[%s246 + $0x28] sm:$0xff]
      %v263 = vld [vmem:[%s246 + $0x30] sm:$0xff]
      %v264 = vld [vmem:[%s246 + $0x38] sm:$0xff]
      %v265 = vld [vmem:[%s246 + $0x40] sm:$0xff]
      %v266 = vld [vmem:[%s246 + $0x48] sm:$0xff]
      %v267 = vld [vmem:[%s246 + $0x50] sm:$0xff]
      %v268 = vld [vmem:[%s246 + $0x58] sm:$0xff]
      %v269 = vld [vmem:[%s246 + $0x60] sm:$0xff]
      %v270 = vld [vmem:[%s246 + $0x68] sm:$0xff]
      %v271 = vld [vmem:[%s246 + $0x70] sm:$0xff]
      %v272 = vld [vmem:[%s246 + $0x78] sm:$0xff]
      %v273 = vlaneseq
      %v274 = vand.u32 %v273, 127
      %275 = vset.pattern.permute.xlu0 0
      %276 = vperm.xlu0 %275, %v257
      %v277 = vpop.permute.xlu0 %276
      %278 = vset.pattern.permute.xlu0 0
      %279 = vperm.xlu0 %278, %v258
      %v280 = vpop.permute.xlu0 %279
      %281 = vset.pattern.permute.xlu0 0
      %282 = vperm.xlu0 %281, %v259
      %v283 = vpop.permute.xlu0 %282
      %284 = vset.pattern.permute.xlu0 0
      %285 = vperm.xlu0 %284, %v260
      %v286 = vpop.permute.xlu0 %285
      %287 = vset.pattern.permute.xlu0 0
      %288 = vperm.xlu0 %287, %v261
      %v289 = vpop.permute.xlu0 %288
      %290 = vset.pattern.permute.xlu0 0
      %291 = vperm.xlu0 %290, %v262
      %v292 = vpop.permute.xlu0 %291
      %293 = vset.pattern.permute.xlu0 0
      %294 = vperm.xlu0 %293, %v263
      %v295 = vpop.permute.xlu0 %294
      %296 = vset.pattern.permute.xlu0 0
      %297 = vperm.xlu0 %296, %v264
      %v298 = vpop.permute.xlu0 %297
      %299 = vset.pattern.permute.xlu0 0
      %300 = vperm.xlu0 %299, %v265
      %v301 = vpop.permute.xlu0 %300
      %302 = vset.pattern.permute.xlu0 0
      %303 = vperm.xlu0 %302, %v266
      %v304 = vpop.permute.xlu0 %303
      %305 = vset.pattern.permute.xlu0 0
      %306 = vperm.xlu0 %305, %v267
      %v307 = vpop.permute.xlu0 %306
      %308 = vset.pattern.permute.xlu0 0
      %309 = vperm.xlu0 %308, %v268
      %v310 = vpop.permute.xlu0 %309
      %311 = vset.pattern.permute.xlu0 0
      %312 = vperm.xlu0 %311, %v269
      %v313 = vpop.permute.xlu0 %312
      %314 = vset.pattern.permute.xlu0 0
      %315 = vperm.xlu0 %314, %v270
      %v316 = vpop.permute.xlu0 %315
      %317 = vset.pattern.permute.xlu0 0
      %318 = vperm.xlu0 %317, %v271
      %v319 = vpop.permute.xlu0 %318
      %320 = vset.pattern.permute.xlu0 0
      %321 = vperm.xlu0 %320, %v272
      %v322 = vpop.permute.xlu0 %321
      %vm323 = vcmp.eq.s32.totalorder %v277, %v274
      %vm324 = vcmp.eq.s32.totalorder %v280, %v274
      %vm325 = vcmp.eq.s32.totalorder %v283, %v274
      %vm326 = vcmp.eq.s32.totalorder %v286, %v274
      %vm327 = vcmp.eq.s32.totalorder %v289, %v274
      %vm328 = vcmp.eq.s32.totalorder %v292, %v274
      %vm329 = vcmp.eq.s32.totalorder %v295, %v274
      %vm330 = vcmp.eq.s32.totalorder %v298, %v274
      %vm331 = vcmp.eq.s32.totalorder %v301, %v274
      %vm332 = vcmp.eq.s32.totalorder %v304, %v274
      %vm333 = vcmp.eq.s32.totalorder %v307, %v274
      %vm334 = vcmp.eq.s32.totalorder %v310, %v274
      %vm335 = vcmp.eq.s32.totalorder %v313, %v274
      %vm336 = vcmp.eq.s32.totalorder %v316, %v274
      %vm337 = vcmp.eq.s32.totalorder %v319, %v274
      %vm338 = vcmp.eq.s32.totalorder %v322, %v274
      %p339 = scmp.eq.s32.totalorder %s21, 0
      // Predicated region
      $region37: #{tpu_custom_call.1} parent=35 // pred_check
        %p340 = pneg %p339
      $region38: #{tpu_custom_call.1} parent=35 // pred_check_branch
        %342 = sbr.rel (%p340) target = $region40
      $region39: #{tpu_custom_call.1} parent=35 // pred_region
        %p343 = scmp.eq.s32.totalorder %s22, 0
        // Predicated region
        $region41: #{tpu_custom_call.1} parent=39 // pred_check
          %p344 = pneg %p343
        $region42: #{tpu_custom_call.1} parent=39 // pred_check_branch
          %346 = sbr.rel (%p344) target = $region44
        $region43: #{tpu_custom_call.1} parent=39 // pred_region
          %347 = vst [vmem:[#allocation2] sm:$0x1] -inf
          %348 = vst [vmem:[#allocation3] sm:$0x1] 0.0
        $region44: #{tpu_custom_call.1} parent=39 // pred_fallthru
          _
        %v349 = vld [vmem:[%s238] sm:$0xff]
        %v350 = vld [vmem:[%s238 + $0x8] sm:$0xff]
        %v351 = vld [vmem:[%s238 + $0x10] sm:$0xff]
        %v352 = vld [vmem:[%s238 + $0x18] sm:$0xff]
        %v353 = vld [vmem:[%s238 + $0x20] sm:$0xff]
        %v354 = vld [vmem:[%s238 + $0x28] sm:$0xff]
        %v355 = vld [vmem:[%s238 + $0x30] sm:$0xff]
        %v356 = vld [vmem:[%s238 + $0x38] sm:$0xff]
        %v357 = vld [vmem:[%s238 + $0x40] sm:$0xff]
        %v358 = vld [vmem:[%s238 + $0x48] sm:$0xff]
        %v359 = vld [vmem:[%s238 + $0x50] sm:$0xff]
        %v360 = vld [vmem:[%s238 + $0x58] sm:$0xff]
        %v361 = vld [vmem:[%s238 + $0x60] sm:$0xff]
        %v362 = vld [vmem:[%s238 + $0x68] sm:$0xff]
        %v363 = vld [vmem:[%s238 + $0x70] sm:$0xff]
        %v364 = vld [vmem:[%s238 + $0x78] sm:$0xff]
        %v365 = vld [vmem:[%s2] sm:$0x1]
        %v366 = vld [vmem:[#allocation5] sm:$0x1]
        %v368 = vlaneseq
        %v369 = vshrl.u32 %v368, 7
        %v370 = vsub.s32 0, %v369
        %v371 = vrot.slane %v365, %v370
        %v373 = vmul.f32 %v349, %v371
        %v374 = vmul.f32 %v350, %v371
        %v375 = vmul.f32 %v351, %v371
        %v376 = vmul.f32 %v352, %v371
        %v377 = vmul.f32 %v353, %v371
        %v378 = vmul.f32 %v354, %v371
        %v379 = vmul.f32 %v355, %v371
        %v380 = vmul.f32 %v356, %v371
        %v381 = vmul.f32 %v357, %v371
        %v382 = vmul.f32 %v358, %v371
        %v383 = vmul.f32 %v359, %v371
        %v384 = vmul.f32 %v360, %v371
        %v385 = vmul.f32 %v361, %v371
        %v386 = vmul.f32 %v362, %v371
        %v387 = vmul.f32 %v363, %v371
        %v388 = vmul.f32 %v364, %v371
        %vm389 = vcmask 523264
        %v390 = vsel %vm389, %v373, 0.0
        %391 = vadd.xlane.f32.xlu0 %v390
        %v392 = vpop.xlane.xlu0 %391
        %v393 = vsel %vm389, %v374, 0.0
        %394 = vadd.xlane.f32.xlu0 %v393
        %v395 = vpop.xlane.xlu0 %394
        %v396 = vsel %vm389, %v375, 0.0
        %397 = vadd.xlane.f32.xlu0 %v396
        %v398 = vpop.xlane.xlu0 %397
        %v399 = vsel %vm389, %v376, 0.0
        %400 = vadd.xlane.f32.xlu0 %v399
        %v401 = vpop.xlane.xlu0 %400
        %v402 = vsel %vm389, %v377, 0.0
        %403 = vadd.xlane.f32.xlu0 %v402
        %v404 = vpop.xlane.xlu0 %403
        %v405 = vsel %vm389, %v378, 0.0
        %406 = vadd.xlane.f32.xlu0 %v405
        %v407 = vpop.xlane.xlu0 %406
        %v408 = vsel %vm389, %v379, 0.0
        %409 = vadd.xlane.f32.xlu0 %v408
        %v410 = vpop.xlane.xlu0 %409
        %v411 = vsel %vm389, %v380, 0.0
        %412 = vadd.xlane.f32.xlu0 %v411
        %v413 = vpop.xlane.xlu0 %412
        %v414 = vsel %vm389, %v381, 0.0
        %415 = vadd.xlane.f32.xlu0 %v414
        %v416 = vpop.xlane.xlu0 %415
        %v417 = vsel %vm389, %v382, 0.0
        %418 = vadd.xlane.f32.xlu0 %v417
        %v419 = vpop.xlane.xlu0 %418
        %v420 = vsel %vm389, %v383, 0.0
        %421 = vadd.xlane.f32.xlu0 %v420
        %v422 = vpop.xlane.xlu0 %421
        %v423 = vsel %vm389, %v384, 0.0
        %424 = vadd.xlane.f32.xlu0 %v423
        %v425 = vpop.xlane.xlu0 %424
        %v426 = vsel %vm389, %v385, 0.0
        %427 = vadd.xlane.f32.xlu0 %v426
        %v428 = vpop.xlane.xlu0 %427
        %v429 = vsel %vm389, %v386, 0.0
        %430 = vadd.xlane.f32.xlu0 %v429
        %v431 = vpop.xlane.xlu0 %430
        %v432 = vsel %vm389, %v387, 0.0
        %433 = vadd.xlane.f32.xlu0 %v432
        %v434 = vpop.xlane.xlu0 %433
        %v435 = vsel %vm389, %v388, 0.0
        %436 = vadd.xlane.f32.xlu0 %v435
        %v437 = vpop.xlane.xlu0 %436
        %v439 = vlaneseq
        %v440 = vshrl.u32 %v439, 7
        %v441 = vsub.s32 0, %v440
        %v442 = vrot.slane %v366, %v441
        %v444 = vadd.f32 %v392, %v442
        %v445 = vadd.f32 %v395, %v442
        %v446 = vadd.f32 %v398, %v442
        %v447 = vadd.f32 %v401, %v442
        %v448 = vadd.f32 %v404, %v442
        %v449 = vadd.f32 %v407, %v442
        %v450 = vadd.f32 %v410, %v442
        %v451 = vadd.f32 %v413, %v442
        %v452 = vadd.f32 %v416, %v442
        %v453 = vadd.f32 %v419, %v442
        %v454 = vadd.f32 %v422, %v442
        %v455 = vadd.f32 %v425, %v442
        %v456 = vadd.f32 %v428, %v442
        %v457 = vadd.f32 %v431, %v442
        %v458 = vadd.f32 %v434, %v442
        %v459 = vadd.f32 %v437, %v442
        %s460 = scalar_lea.vmem [#allocation4], %s256
        %vm461 = vcmask 7168
        %462 = vst.msk [vmem:[%s460] sm:$0xff] %vm461, %v444
        %463 = vst.msk [vmem:[%s460 + $0x8] sm:$0xff] %vm461, %v445
        %464 = vst.msk [vmem:[%s460 + $0x10] sm:$0xff] %vm461, %v446
        %465 = vst.msk [vmem:[%s460 + $0x18] sm:$0xff] %vm461, %v447
        %466 = vst.msk [vmem:[%s460 + $0x20] sm:$0xff] %vm461, %v448
        %467 = vst.msk [vmem:[%s460 + $0x28] sm:$0xff] %vm461, %v449
        %468 = vst.msk [vmem:[%s460 + $0x30] sm:$0xff] %vm461, %v450
        %469 = vst.msk [vmem:[%s460 + $0x38] sm:$0xff] %vm461, %v451
        %470 = vst.msk [vmem:[%s460 + $0x40] sm:$0xff] %vm461, %v452
        %471 = vst.msk [vmem:[%s460 + $0x48] sm:$0xff] %vm461, %v453
        %472 = vst.msk [vmem:[%s460 + $0x50] sm:$0xff] %vm461, %v454
        %473 = vst.msk [vmem:[%s460 + $0x58] sm:$0xff] %vm461, %v455
        %474 = vst.msk [vmem:[%s460 + $0x60] sm:$0xff] %vm461, %v456
        %475 = vst.msk [vmem:[%s460 + $0x68] sm:$0xff] %vm461, %v457
        %476 = vst.msk [vmem:[%s460 + $0x70] sm:$0xff] %vm461, %v458
        %477 = vst.msk [vmem:[%s460 + $0x78] sm:$0xff] %vm461, %v459
        %v478 = vld [vmem:[#allocation2] sm:$0x1]
        %v479 = vld [vmem:[#allocation3] sm:$0x1]
        %481 = vset.pattern.permute.xlu0 0
        %482 = vperm.xlu0 %481, %v444
        %v483 = vpop.permute.xlu0 %482
        %486 = vset.pattern.permute.xlu0 0
        %487 = vperm.xlu0 %486, %v445
        %v488 = vpop.permute.xlu0 %487
        %491 = vset.pattern.permute.xlu0 0
        %492 = vperm.xlu0 %491, %v446
        %v493 = vpop.permute.xlu0 %492
        %496 = vset.pattern.permute.xlu0 0
        %497 = vperm.xlu0 %496, %v447
        %v498 = vpop.permute.xlu0 %497
        %501 = vset.pattern.permute.xlu0 0
        %502 = vperm.xlu0 %501, %v448
        %v503 = vpop.permute.xlu0 %502
        %506 = vset.pattern.permute.xlu0 0
        %507 = vperm.xlu0 %506, %v449
        %v508 = vpop.permute.xlu0 %507
        %511 = vset.pattern.permute.xlu0 0
        %512 = vperm.xlu0 %511, %v450
        %v513 = vpop.permute.xlu0 %512
        %516 = vset.pattern.permute.xlu0 0
        %517 = vperm.xlu0 %516, %v451
        %v518 = vpop.permute.xlu0 %517
        %521 = vset.pattern.permute.xlu0 0
        %522 = vperm.xlu0 %521, %v452
        %v523 = vpop.permute.xlu0 %522
        %526 = vset.pattern.permute.xlu0 0
        %527 = vperm.xlu0 %526, %v453
        %v528 = vpop.permute.xlu0 %527
        %531 = vset.pattern.permute.xlu0 0
        %532 = vperm.xlu0 %531, %v454
        %v533 = vpop.permute.xlu0 %532
        %536 = vset.pattern.permute.xlu0 0
        %537 = vperm.xlu0 %536, %v455
        %v538 = vpop.permute.xlu0 %537
        %541 = vset.pattern.permute.xlu0 0
        %542 = vperm.xlu0 %541, %v456
        %v543 = vpop.permute.xlu0 %542
        %546 = vset.pattern.permute.xlu0 0
        %547 = vperm.xlu0 %546, %v457
        %v548 = vpop.permute.xlu0 %547
        %551 = vset.pattern.permute.xlu0 0
        %552 = vperm.xlu0 %551, %v458
        %v553 = vpop.permute.xlu0 %552
        %556 = vset.pattern.permute.xlu0 0
        %557 = vperm.xlu0 %556, %v459
        %v558 = vpop.permute.xlu0 %557
        %v560 = vsel %vm323, %v483, -inf
        %v561 = vsel %vm324, %v488, -inf
        %v562 = vsel %vm325, %v493, -inf
        %v563 = vsel %vm326, %v498, -inf
        %v564 = vsel %vm327, %v503, -inf
        %v565 = vsel %vm328, %v508, -inf
        %v566 = vsel %vm329, %v513, -inf
        %v567 = vsel %vm330, %v518, -inf
        %v568 = vsel %vm331, %v523, -inf
        %v569 = vsel %vm332, %v528, -inf
        %v570 = vsel %vm333, %v533, -inf
        %v571 = vsel %vm334, %v538, -inf
        %v572 = vsel %vm335, %v543, -inf
        %v573 = vsel %vm336, %v548, -inf
        %v574 = vsel %vm337, %v553, -inf
        %v575 = vsel %vm338, %v558, -inf
        %v576 = vmax.f32 %v560, %v564
        %v577 = vmax.f32 %v561, %v565
        %v578 = vmax.f32 %v562, %v566
        %v579 = vmax.f32 %v563, %v567
        %v580 = vmax.f32 %v576, %v568
        %v581 = vmax.f32 %v577, %v569
        %v582 = vmax.f32 %v578, %v570
        %v583 = vmax.f32 %v579, %v571
        %v584 = vmax.f32 %v580, %v572
        %v585 = vmax.f32 %v581, %v573
        %v586 = vmax.f32 %v582, %v574
        %v587 = vmax.f32 %v583, %v575
        %v588 = vmax.f32 %v584, %v585
        %v589 = vmax.f32 %v586, %v587
        %v590 = vmax.f32 %v588, %v589
        %v591 = vrot.slane %v590, 4
        %v592 = vmax.f32 %v590, %v591
        %v593 = vrot.slane %v592, 2
        %v594 = vmax.f32 %v592, %v593
        %v595 = vrot.slane %v594, 1
        %v596 = vmax.f32 %v594, %v595
        %v597 = vmax.f32 %v478, %v596
        %vm598 = vcmp.eq.f32.partialorder %v597, -inf
        %v599 = vsub.f32 %v478, %v597
        %v600 = vmul.f32 %v599, 1.442695
        %v601 = vpow.pop %v600
        %v602 = vsel %vm598, 0.0, %v601
        %v604 = vlaneseq
        %v605 = vshrl.u32 %v604, 7
        %v606 = vsub.s32 0, %v605
        %v607 = vrot.slane %v597, %v606
        %v609 = vsel %vm323, %v607, 0.0
        %v610 = vsel %vm324, %v607, 0.0
        %v611 = vsel %vm325, %v607, 0.0
        %v612 = vsel %vm326, %v607, 0.0
        %v613 = vsel %vm327, %v607, 0.0
        %v614 = vsel %vm328, %v607, 0.0
        %v615 = vsel %vm329, %v607, 0.0
        %v616 = vsel %vm330, %v607, 0.0
        %v617 = vsel %vm331, %v607, 0.0
        %v618 = vsel %vm332, %v607, 0.0
        %v619 = vsel %vm333, %v607, 0.0
        %v620 = vsel %vm334, %v607, 0.0
        %v621 = vsel %vm335, %v607, 0.0
        %v622 = vsel %vm336, %v607, 0.0
        %v623 = vsel %vm337, %v607, 0.0
        %v624 = vsel %vm338, %v607, 0.0
        %625 = vadd.xlane.f32.xlu0 %v609
        %v626 = vpop.xlane.xlu0 %625
        %627 = vadd.xlane.f32.xlu0 %v610
        %v628 = vpop.xlane.xlu0 %627
        %629 = vadd.xlane.f32.xlu0 %v611
        %v630 = vpop.xlane.xlu0 %629
        %631 = vadd.xlane.f32.xlu0 %v612
        %v632 = vpop.xlane.xlu0 %631
        %633 = vadd.xlane.f32.xlu0 %v613
        %v634 = vpop.xlane.xlu0 %633
        %635 = vadd.xlane.f32.xlu0 %v614
        %v636 = vpop.xlane.xlu0 %635
        %637 = vadd.xlane.f32.xlu0 %v615
        %v638 = vpop.xlane.xlu0 %637
        %639 = vadd.xlane.f32.xlu0 %v616
        %v640 = vpop.xlane.xlu0 %639
        %641 = vadd.xlane.f32.xlu0 %v617
        %v642 = vpop.xlane.xlu0 %641
        %643 = vadd.xlane.f32.xlu0 %v618
        %v644 = vpop.xlane.xlu0 %643
        %645 = vadd.xlane.f32.xlu0 %v619
        %v646 = vpop.xlane.xlu0 %645
        %647 = vadd.xlane.f32.xlu0 %v620
        %v648 = vpop.xlane.xlu0 %647
        %649 = vadd.xlane.f32.xlu0 %v621
        %v650 = vpop.xlane.xlu0 %649
        %651 = vadd.xlane.f32.xlu0 %v622
        %v652 = vpop.xlane.xlu0 %651
        %653 = vadd.xlane.f32.xlu0 %v623
        %v654 = vpop.xlane.xlu0 %653
        %655 = vadd.xlane.f32.xlu0 %v624
        %v656 = vpop.xlane.xlu0 %655
        %v657 = vsub.f32 %v444, %v626
        %v658 = vsub.f32 %v445, %v628
        %v659 = vsub.f32 %v446, %v630
        %v660 = vsub.f32 %v447, %v632
        %v661 = vsub.f32 %v448, %v634
        %v662 = vsub.f32 %v449, %v636
        %v663 = vsub.f32 %v450, %v638
        %v664 = vsub.f32 %v451, %v640
        %v665 = vsub.f32 %v452, %v642
        %v666 = vsub.f32 %v453, %v644
        %v667 = vsub.f32 %v454, %v646
        %v668 = vsub.f32 %v455, %v648
        %v669 = vsub.f32 %v456, %v650
        %v670 = vsub.f32 %v457, %v652
        %v671 = vsub.f32 %v458, %v654
        %v672 = vsub.f32 %v459, %v656
        %v673 = vmul.f32 %v657, 1.442695
        %v674 = vpow.pop %v673
        %v675 = vmul.f32 %v658, 1.442695
        %v676 = vpow.pop %v675
        %v677 = vmul.f32 %v659, 1.442695
        %v678 = vpow.pop %v677
        %v679 = vmul.f32 %v660, 1.442695
        %v680 = vpow.pop %v679
        %v681 = vmul.f32 %v661, 1.442695
        %v682 = vpow.pop %v681
        %v683 = vmul.f32 %v662, 1.442695
        %v684 = vpow.pop %v683
        %v685 = vmul.f32 %v663, 1.442695
        %v686 = vpow.pop %v685
        %v687 = vmul.f32 %v664, 1.442695
        %v688 = vpow.pop %v687
        %v689 = vmul.f32 %v665, 1.442695
        %v690 = vpow.pop %v689
        %v691 = vmul.f32 %v666, 1.442695
        %v692 = vpow.pop %v691
        %v693 = vmul.f32 %v667, 1.442695
        %v694 = vpow.pop %v693
        %v695 = vmul.f32 %v668, 1.442695
        %v696 = vpow.pop %v695
        %v697 = vmul.f32 %v669, 1.442695
        %v698 = vpow.pop %v697
        %v699 = vmul.f32 %v670, 1.442695
        %v700 = vpow.pop %v699
        %v701 = vmul.f32 %v671, 1.442695
        %v702 = vpow.pop %v701
        %v703 = vmul.f32 %v672, 1.442695
        %v704 = vpow.pop %v703
        %706 = vset.pattern.permute.xlu0 0
        %707 = vperm.xlu0 %706, %v674
        %v708 = vpop.permute.xlu0 %707
        %711 = vset.pattern.permute.xlu0 0
        %712 = vperm.xlu0 %711, %v676
        %v713 = vpop.permute.xlu0 %712
        %716 = vset.pattern.permute.xlu0 0
        %717 = vperm.xlu0 %716, %v678
        %v718 = vpop.permute.xlu0 %717
        %721 = vset.pattern.permute.xlu0 0
        %722 = vperm.xlu0 %721, %v680
        %v723 = vpop.permute.xlu0 %722
        %726 = vset.pattern.permute.xlu0 0
        %727 = vperm.xlu0 %726, %v682
        %v728 = vpop.permute.xlu0 %727
        %731 = vset.pattern.permute.xlu0 0
        %732 = vperm.xlu0 %731, %v684
        %v733 = vpop.permute.xlu0 %732
        %736 = vset.pattern.permute.xlu0 0
        %737 = vperm.xlu0 %736, %v686
        %v738 = vpop.permute.xlu0 %737
        %741 = vset.pattern.permute.xlu0 0
        %742 = vperm.xlu0 %741, %v688
        %v743 = vpop.permute.xlu0 %742
        %746 = vset.pattern.permute.xlu0 0
        %747 = vperm.xlu0 %746, %v690
        %v748 = vpop.permute.xlu0 %747
        %751 = vset.pattern.permute.xlu0 0
        %752 = vperm.xlu0 %751, %v692
        %v753 = vpop.permute.xlu0 %752
        %756 = vset.pattern.permute.xlu0 0
        %757 = vperm.xlu0 %756, %v694
        %v758 = vpop.permute.xlu0 %757
        %761 = vset.pattern.permute.xlu0 0
        %762 = vperm.xlu0 %761, %v696
        %v763 = vpop.permute.xlu0 %762
        %766 = vset.pattern.permute.xlu0 0
        %767 = vperm.xlu0 %766, %v698
        %v768 = vpop.permute.xlu0 %767
        %771 = vset.pattern.permute.xlu0 0
        %772 = vperm.xlu0 %771, %v700
        %v773 = vpop.permute.xlu0 %772
        %776 = vset.pattern.permute.xlu0 0
        %777 = vperm.xlu0 %776, %v702
        %v778 = vpop.permute.xlu0 %777
        %781 = vset.pattern.permute.xlu0 0
        %782 = vperm.xlu0 %781, %v704
        %v783 = vpop.permute.xlu0 %782
        %v785 = vsel %vm323, %v708, 0.0
        %v786 = vsel %vm324, %v713, 0.0
        %v787 = vsel %vm325, %v718, 0.0
        %v788 = vsel %vm326, %v723, 0.0
        %v789 = vsel %vm327, %v728, 0.0
        %v790 = vsel %vm328, %v733, 0.0
        %v791 = vsel %vm329, %v738, 0.0
        %v792 = vsel %vm330, %v743, 0.0
        %v793 = vsel %vm331, %v748, 0.0
        %v794 = vsel %vm332, %v753, 0.0
        %v795 = vsel %vm333, %v758, 0.0
        %v796 = vsel %vm334, %v763, 0.0
        %v797 = vsel %vm335, %v768, 0.0
        %v798 = vsel %vm336, %v773, 0.0
        %v799 = vsel %vm337, %v778, 0.0
        %v800 = vsel %vm338, %v783, 0.0
        %v801 = vadd.f32 %v785, %v786
        %v802 = vadd.f32 %v801, %v787
        %v803 = vadd.f32 %v802, %v788
        %v804 = vadd.f32 %v803, %v789
        %v805 = vadd.f32 %v804, %v790
        %v806 = vadd.f32 %v805, %v791
        %v807 = vadd.f32 %v806, %v792
        %v808 = vadd.f32 %v807, %v793
        %v809 = vadd.f32 %v808, %v794
        %v810 = vadd.f32 %v809, %v795
        %v811 = vadd.f32 %v810, %v796
        %v812 = vadd.f32 %v811, %v797
        %v813 = vadd.f32 %v812, %v798
        %v814 = vadd.f32 %v813, %v799
        %v815 = vadd.f32 %v814, %v800
        %v816 = vrot.slane %v815, 4
        %v817 = vadd.f32 %v815, %v816
        %v818 = vrot.slane %v817, 2
        %v819 = vadd.f32 %v817, %v818
        %v820 = vrot.slane %v819, 1
        %v821 = vadd.f32 %v819, %v820
        %822 = vst [vmem:[#allocation2] sm:$0x1] %v597
        %v823 = vmul.f32 %v479, %v602
        %v824 = vadd.f32 %v823, %v821
        %825 = vst [vmem:[#allocation3] sm:$0x1] %v824
      $region40: #{tpu_custom_call.1} parent=35 // pred_fallthru
        _
      %p826 = scmp.eq.s32.totalorder %s21, 1
      // Predicated region
      $region45: #{tpu_custom_call.1} parent=35 // pred_check
        %p827 = pneg %p826
      $region46: #{tpu_custom_call.1} parent=35 // pred_check_branch
        %829 = sbr.rel (%p827) target = $region48
      $region47: #{tpu_custom_call.1} parent=35 // pred_region
        %p830 = scmp.eq.s32.totalorder %s22, 0
        // Predicated region
        $region49: #{tpu_custom_call.1} parent=47 // pred_check
          %p831 = pneg %p830
        $region50: #{tpu_custom_call.1} parent=47 // pred_check_branch
          %833 = sbr.rel (%p831) target = $region52
        $region51: #{tpu_custom_call.1} parent=47 // pred_region
          %v834 = vld [vmem:[#allocation3] sm:$0x1]
          %v835 = vadd.f32 %v834, 1e-13
          %v836 = vrcp.pop %v835
          %v837 = vmul.f32 %v835, %v836
          %v838 = vsub.f32 2.0, %v837
          %v839 = vmul.f32 %v836, %v838
          %v840 = vmul.f32 %v835, %v839
          %v841 = vsub.f32 2.0, %v840
          %v842 = vmul.f32 %v839, %v841
          %843 = vst [vmem:[#allocation3] sm:$0x1] %v842
        $region52: #{tpu_custom_call.1} parent=47 // pred_fallthru
          _
        %s844 = scalar_lea.vmem [#allocation4], %s256
        %v845 = vld [vmem:[%s844] sm:$0xff]
        %v846 = vld [vmem:[%s844 + $0x8] sm:$0xff]
        %v847 = vld [vmem:[%s844 + $0x10] sm:$0xff]
        %v848 = vld [vmem:[%s844 + $0x18] sm:$0xff]
        %v849 = vld [vmem:[%s844 + $0x20] sm:$0xff]
        %v850 = vld [vmem:[%s844 + $0x28] sm:$0xff]
        %v851 = vld [vmem:[%s844 + $0x30] sm:$0xff]
        %v852 = vld [vmem:[%s844 + $0x38] sm:$0xff]
        %v853 = vld [vmem:[%s844 + $0x40] sm:$0xff]
        %v854 = vld [vmem:[%s844 + $0x48] sm:$0xff]
        %v855 = vld [vmem:[%s844 + $0x50] sm:$0xff]
        %v856 = vld [vmem:[%s844 + $0x58] sm:$0xff]
        %v857 = vld [vmem:[%s844 + $0x60] sm:$0xff]
        %v858 = vld [vmem:[%s844 + $0x68] sm:$0xff]
        %v859 = vld [vmem:[%s844 + $0x70] sm:$0xff]
        %v860 = vld [vmem:[%s844 + $0x78] sm:$0xff]
        %v861 = vld [vmem:[#allocation2] sm:$0x1]
        %v863 = vlaneseq
        %v864 = vshrl.u32 %v863, 7
        %v865 = vsub.s32 0, %v864
        %v866 = vrot.slane %v861, %v865
        %v868 = vsel %vm323, %v866, 0.0
        %v869 = vsel %vm324, %v866, 0.0
        %v870 = vsel %vm325, %v866, 0.0
        %v871 = vsel %vm326, %v866, 0.0
        %v872 = vsel %vm327, %v866, 0.0
        %v873 = vsel %vm328, %v866, 0.0
        %v874 = vsel %vm329, %v866, 0.0
        %v875 = vsel %vm330, %v866, 0.0
        %v876 = vsel %vm331, %v866, 0.0
        %v877 = vsel %vm332, %v866, 0.0
        %v878 = vsel %vm333, %v866, 0.0
        %v879 = vsel %vm334, %v866, 0.0
        %v880 = vsel %vm335, %v866, 0.0
        %v881 = vsel %vm336, %v866, 0.0
        %v882 = vsel %vm337, %v866, 0.0
        %v883 = vsel %vm338, %v866, 0.0
        %884 = vadd.xlane.f32.xlu0 %v868
        %v885 = vpop.xlane.xlu0 %884
        %886 = vadd.xlane.f32.xlu0 %v869
        %v887 = vpop.xlane.xlu0 %886
        %888 = vadd.xlane.f32.xlu0 %v870
        %v889 = vpop.xlane.xlu0 %888
        %890 = vadd.xlane.f32.xlu0 %v871
        %v891 = vpop.xlane.xlu0 %890
        %892 = vadd.xlane.f32.xlu0 %v872
        %v893 = vpop.xlane.xlu0 %892
        %894 = vadd.xlane.f32.xlu0 %v873
        %v895 = vpop.xlane.xlu0 %894
        %896 = vadd.xlane.f32.xlu0 %v874
        %v897 = vpop.xlane.xlu0 %896
        %898 = vadd.xlane.f32.xlu0 %v875
        %v899 = vpop.xlane.xlu0 %898
        %900 = vadd.xlane.f32.xlu0 %v876
        %v901 = vpop.xlane.xlu0 %900
        %902 = vadd.xlane.f32.xlu0 %v877
        %v903 = vpop.xlane.xlu0 %902
        %904 = vadd.xlane.f32.xlu0 %v878
        %v905 = vpop.xlane.xlu0 %904
        %906 = vadd.xlane.f32.xlu0 %v879
        %v907 = vpop.xlane.xlu0 %906
        %908 = vadd.xlane.f32.xlu0 %v880
        %v909 = vpop.xlane.xlu0 %908
        %910 = vadd.xlane.f32.xlu0 %v881
        %v911 = vpop.xlane.xlu0 %910
        %912 = vadd.xlane.f32.xlu0 %v882
        %v913 = vpop.xlane.xlu0 %912
        %914 = vadd.xlane.f32.xlu0 %v883
        %v915 = vpop.xlane.xlu0 %914
        %v916 = vld [vmem:[#allocation3] sm:$0x1]
        %v918 = vlaneseq
        %v919 = vshrl.u32 %v918, 7
        %v920 = vsub.s32 0, %v919
        %v921 = vrot.slane %v916, %v920
        %v923 = vsel %vm323, %v921, 0.0
        %v924 = vsel %vm324, %v921, 0.0
        %v925 = vsel %vm325, %v921, 0.0
        %v926 = vsel %vm326, %v921, 0.0
        %v927 = vsel %vm327, %v921, 0.0
        %v928 = vsel %vm328, %v921, 0.0
        %v929 = vsel %vm329, %v921, 0.0
        %v930 = vsel %vm330, %v921, 0.0
        %v931 = vsel %vm331, %v921, 0.0
        %v932 = vsel %vm332, %v921, 0.0
        %v933 = vsel %vm333, %v921, 0.0
        %v934 = vsel %vm334, %v921, 0.0
        %v935 = vsel %vm335, %v921, 0.0
        %v936 = vsel %vm336, %v921, 0.0
        %v937 = vsel %vm337, %v921, 0.0
        %v938 = vsel %vm338, %v921, 0.0
        %939 = vadd.xlane.f32.xlu0 %v923
        %v940 = vpop.xlane.xlu0 %939
        %941 = vadd.xlane.f32.xlu0 %v924
        %v942 = vpop.xlane.xlu0 %941
        %943 = vadd.xlane.f32.xlu0 %v925
        %v944 = vpop.xlane.xlu0 %943
        %945 = vadd.xlane.f32.xlu0 %v926
        %v946 = vpop.xlane.xlu0 %945
        %947 = vadd.xlane.f32.xlu0 %v927
        %v948 = vpop.xlane.xlu0 %947
        %949 = vadd.xlane.f32.xlu0 %v928
        %v950 = vpop.xlane.xlu0 %949
        %951 = vadd.xlane.f32.xlu0 %v929
        %v952 = vpop.xlane.xlu0 %951
        %953 = vadd.xlane.f32.xlu0 %v930
        %v954 = vpop.xlane.xlu0 %953
        %955 = vadd.xlane.f32.xlu0 %v931
        %v956 = vpop.xlane.xlu0 %955
        %957 = vadd.xlane.f32.xlu0 %v932
        %v958 = vpop.xlane.xlu0 %957
        %959 = vadd.xlane.f32.xlu0 %v933
        %v960 = vpop.xlane.xlu0 %959
        %961 = vadd.xlane.f32.xlu0 %v934
        %v962 = vpop.xlane.xlu0 %961
        %963 = vadd.xlane.f32.xlu0 %v935
        %v964 = vpop.xlane.xlu0 %963
        %965 = vadd.xlane.f32.xlu0 %v936
        %v966 = vpop.xlane.xlu0 %965
        %967 = vadd.xlane.f32.xlu0 %v937
        %v968 = vpop.xlane.xlu0 %967
        %969 = vadd.xlane.f32.xlu0 %v938
        %v970 = vpop.xlane.xlu0 %969
        %v971 = vsub.f32 %v845, %v885
        %v972 = vsub.f32 %v846, %v887
        %v973 = vsub.f32 %v847, %v889
        %v974 = vsub.f32 %v848, %v891
        %v975 = vsub.f32 %v849, %v893
        %v976 = vsub.f32 %v850, %v895
        %v977 = vsub.f32 %v851, %v897
        %v978 = vsub.f32 %v852, %v899
        %v979 = vsub.f32 %v853, %v901
        %v980 = vsub.f32 %v854, %v903
        %v981 = vsub.f32 %v855, %v905
        %v982 = vsub.f32 %v856, %v907
        %v983 = vsub.f32 %v857, %v909
        %v984 = vsub.f32 %v858, %v911
        %v985 = vsub.f32 %v859, %v913
        %v986 = vsub.f32 %v860, %v915
        %v987 = vmul.f32 %v971, 1.442695
        %v988 = vpow.pop %v987
        %v989 = vmul.f32 %v972, 1.442695
        %v990 = vpow.pop %v989
        %v991 = vmul.f32 %v973, 1.442695
        %v992 = vpow.pop %v991
        %v993 = vmul.f32 %v974, 1.442695
        %v994 = vpow.pop %v993
        %v995 = vmul.f32 %v975, 1.442695
        %v996 = vpow.pop %v995
        %v997 = vmul.f32 %v976, 1.442695
        %v998 = vpow.pop %v997
        %v999 = vmul.f32 %v977, 1.442695
        %v1000 = vpow.pop %v999
        %v1001 = vmul.f32 %v978, 1.442695
        %v1002 = vpow.pop %v1001
        %v1003 = vmul.f32 %v979, 1.442695
        %v1004 = vpow.pop %v1003
        %v1005 = vmul.f32 %v980, 1.442695
        %v1006 = vpow.pop %v1005
        %v1007 = vmul.f32 %v981, 1.442695
        %v1008 = vpow.pop %v1007
        %v1009 = vmul.f32 %v982, 1.442695
        %v1010 = vpow.pop %v1009
        %v1011 = vmul.f32 %v983, 1.442695
        %v1012 = vpow.pop %v1011
        %v1013 = vmul.f32 %v984, 1.442695
        %v1014 = vpow.pop %v1013
        %v1015 = vmul.f32 %v985, 1.442695
        %v1016 = vpow.pop %v1015
        %v1017 = vmul.f32 %v986, 1.442695
        %v1018 = vpow.pop %v1017
        %v1019 = vmul.f32 %v988, %v940
        %v1020 = vmul.f32 %v990, %v942
        %v1021 = vmul.f32 %v992, %v944
        %v1022 = vmul.f32 %v994, %v946
        %v1023 = vmul.f32 %v996, %v948
        %v1024 = vmul.f32 %v998, %v950
        %v1025 = vmul.f32 %v1000, %v952
        %v1026 = vmul.f32 %v1002, %v954
        %v1027 = vmul.f32 %v1004, %v956
        %v1028 = vmul.f32 %v1006, %v958
        %v1029 = vmul.f32 %v1008, %v960
        %v1030 = vmul.f32 %v1010, %v962
        %v1031 = vmul.f32 %v1012, %v964
        %v1032 = vmul.f32 %v1014, %v966
        %v1033 = vmul.f32 %v1016, %v968
        %v1034 = vmul.f32 %v1018, %v970
        %vm1035 = vcmask 7168
        %1036 = vst.msk [vmem:[%s253] sm:$0xff] %vm1035, %v1019
        %1037 = vst.msk [vmem:[%s253 + $0x8] sm:$0xff] %vm1035, %v1020
        %1038 = vst.msk [vmem:[%s253 + $0x10] sm:$0xff] %vm1035, %v1021
        %1039 = vst.msk [vmem:[%s253 + $0x18] sm:$0xff] %vm1035, %v1022
        %1040 = vst.msk [vmem:[%s253 + $0x20] sm:$0xff] %vm1035, %v1023
        %1041 = vst.msk [vmem:[%s253 + $0x28] sm:$0xff] %vm1035, %v1024
        %1042 = vst.msk [vmem:[%s253 + $0x30] sm:$0xff] %vm1035, %v1025
        %1043 = vst.msk [vmem:[%s253 + $0x38] sm:$0xff] %vm1035, %v1026
        %1044 = vst.msk [vmem:[%s253 + $0x40] sm:$0xff] %vm1035, %v1027
        %1045 = vst.msk [vmem:[%s253 + $0x48] sm:$0xff] %vm1035, %v1028
        %1046 = vst.msk [vmem:[%s253 + $0x50] sm:$0xff] %vm1035, %v1029
        %1047 = vst.msk [vmem:[%s253 + $0x58] sm:$0xff] %vm1035, %v1030
        %1048 = vst.msk [vmem:[%s253 + $0x60] sm:$0xff] %vm1035, %v1031
        %1049 = vst.msk [vmem:[%s253 + $0x68] sm:$0xff] %vm1035, %v1032
        %1050 = vst.msk [vmem:[%s253 + $0x70] sm:$0xff] %vm1035, %v1033
        %1051 = vst.msk [vmem:[%s253 + $0x78] sm:$0xff] %vm1035, %v1034
      $region48: #{tpu_custom_call.1} parent=35 // pred_fallthru
        _
      %s1052 = smul.u32 %s22, %s21
      %s1053 = smul.u32 16, %s1052
      %p1054 = scmp.lt.s32.totalorder %s1053, 47
      %s1055 = scalar_select %p1054, %s1053, 47
      %s1056 = smul.addr %s1055, 8
      %s1057 = scalar_lea.vmem %s4, %s1056
      // Predicated region
      $region53: #{tpu_custom_call.1} parent=35 // pred_check
        %p1058 = pneg %p147
      $region54: #{tpu_custom_call.1} parent=35 // pred_check_branch
        %1060 = sbr.rel (%p1058) target = $region56
      $region55: #{tpu_custom_call.1} parent=35 // pred_region
        %s1061 = smul.u32 %s22, %s21
        %s1062 = smul.u32 16, %s1061
      $region56: #{tpu_custom_call.1} parent=35 // pred_fallthru
        _
    $region36: #{tpu_custom_call.1} parent=5 // pred_fallthru
      _
    %p1063 = scmp.le.s32.totalorder 2, %s12
    // Predicated region
    $region57: #{tpu_custom_call.1} parent=5 // pred_check
      %p1064 = pneg %p1063
    $region58: #{tpu_custom_call.1} parent=5 // pred_check_branch
      %1066 = sbr.rel (%p1064) target = $region60
    $region59: #{tpu_custom_call.1} parent=5 // pred_region
      %s1067 = ssub.s32 %s12, 2
      // Predicated region
      $region61: #{tpu_custom_call.1} parent=59 // pred_check
        %p1068 = pneg %p153
      $region62: #{tpu_custom_call.1} parent=59 // pred_check_branch
        %1070 = sbr.rel (%p1068) target = $region64
      $region63: #{tpu_custom_call.1} parent=59 // pred_region
        %s1071 = smul.u32 %s24, %s23
        %s1072 = smul.u32 16, %s1071
        %p1073 = scmp.lt.s32.totalorder %s1072, 47
        %s1074 = scalar_select %p1073, %s1072, 47
        %s1075 = smul.addr %s1074, 8
        %s1076 = scalar_lea.vmem %s4, %s1075
      $region64: #{tpu_custom_call.1} parent=59 // pred_fallthru
        _
    $region60: #{tpu_custom_call.1} parent=5 // pred_fallthru
      _
  $region6: #{tpu_custom_call.1} parent=0 // loop_footer
    %s16 = sadd.s32 1, %s12
  $region7: #{tpu_custom_call.1} parent=0 // loop_footer_branch
    %11 = sbr.rel target = $region3
  $region8: #{tpu_custom_call.1} parent=0 // loop_exit
    _

</llo_original>
